<compile_context>
chip_gen: v7x
topology: tpu7x:2x2x1
jax: 0.10.0
libtpu: 0.0.40
codegen_flags: <defaults>
</compile_context>

<pallas_src>
import functools

import numpy as np
import jax
import jax.numpy as jnp
from jax.experimental import pallas as pl
from jax.experimental.pallas import tpu as pltpu


def _contrastive_kernel(counts_ref, scores_ref, labels_ref, reverse_ref, out_ref,
                        *, margin: float, g_pad: int):
    """One grid step = one branch (0 = subject, 1 = object)."""
    i = pl.program_id(0)
    n_valid = counts_ref[i, 0]          # true number of relation pairs
    g_valid = counts_ref[i, 1]          # true number of unique nodes (groups)

    scores_t = scores_ref[...].astype(jnp.float32)   # (C, N_PAD), classes on sublanes
    labels = labels_ref[...]                          # (1, N_PAD) int32
    reverse = reverse_ref[...]                        # (1, N_PAD) int32
    n_pad = scores_t.shape[1]

    # --- softmax over predicate classes (sublane axis); only P(class 0) needed.
    m = jnp.max(scores_t, axis=0, keepdims=True)                      # (1, N_PAD)
    e = jnp.exp(scores_t - m)                                         # (C, N_PAD)
    denom = jnp.sum(e, axis=0, keepdims=True)                         # (1, N_PAD)
    p0 = e[0:1, :] * pl.reciprocal(denom, approx=False)
    pos_prob = 1.0 - p0                                               # (1, N_PAD)

    # --- mask padded relation pairs on the cheap (1, N) row (padding also uses -1).
    col = jax.lax.broadcasted_iota(jnp.int32, (1, n_pad), 1)
    rev = jnp.where(col < n_valid, reverse, -1)                       # (1, N_PAD)

    big = jnp.float32(1e30)
    pos_row = jnp.where(labels > 0, pos_prob, big)                    # (1, N_PAD)
    neg_row = jnp.where(labels == 0, pos_prob, -big)                  # (1, N_PAD)

    # --- group membership: (G_PAD, N_PAD), lane-dense over N.
    gid = jax.lax.broadcasted_iota(jnp.int32, (g_pad, n_pad), 0)
    member = rev == gid                                               # (G_PAD, N_PAD)

    pos_vals = jnp.where(member, pos_row, big)
    neg_vals = jnp.where(member, neg_row, -big)
    pos_min = jnp.min(pos_vals, axis=1, keepdims=True)                # (G_PAD, 1)
    neg_max = jnp.max(neg_vals, axis=1, keepdims=True)                # (G_PAD, 1)

    grp = jax.lax.broadcasted_iota(jnp.int32, (g_pad, 1), 0)
    valid = (pos_min < big * 0.5) & (neg_max > -big * 0.5) & (grp < g_valid)

    # margin ranking loss with target = 1: max(0, -(x1 - x2) + margin)
    per_group = jnp.where(valid, jnp.maximum(0.0, margin - (pos_min - neg_max)), 0.0)
    dummy = max(0.0, margin - 1.0)                                    # the (1.0, 0.0) sample
    total = jnp.sum(per_group, axis=0, keepdims=True) + dummy         # (1, 1)
    count = jnp.sum(valid.astype(jnp.float32), axis=0, keepdims=True) + 1.0
    out_ref[...] = total / count


def _round_up(x: int, m: int) -> int:
    return ((max(int(x), 1) + m - 1) // m) * m


def reldn_contrastive_loss(prd_scores_sbj_pos, prd_scores_obj_pos, rel_ret,
                           node_contrastive_margin=0.2):
    """Returns (sbj_contrastive_loss, obj_contrastive_loss) from one fused kernel."""
    sbj_scores = jnp.asarray(prd_scores_sbj_pos)
    obj_scores = jnp.asarray(prd_scores_obj_pos)
    n, c = sbj_scores.shape
    assert obj_scores.shape == (n, c)

    lab_s = jnp.asarray(rel_ret["binary_labels_sbj_pos_int32"], jnp.int32).reshape(-1)
    lab_o = jnp.asarray(rel_ret["binary_labels_obj_pos_int32"], jnp.int32).reshape(-1)
    rev_s = jnp.asarray(rel_ret["inds_reverse_sbj_pos"], jnp.int32).reshape(-1)
    rev_o = jnp.asarray(rel_ret["inds_reverse_obj_pos"], jnp.int32).reshape(-1)
    g_s = int(np.asarray(rel_ret["inds_unique_sbj_pos"]).shape[0])
    g_o = int(np.asarray(rel_ret["inds_unique_obj_pos"]).shape[0])

    # Fixed buckets so that per-batch variation in N / G does not recompile.
    n_pad = _round_up(n, 128)
    g_pad = _round_up(max(g_s, g_o), 8)

    def pad_scores_t(s):                     # (N, C) -> lane-dense (C, N_PAD)
        return jnp.pad(s.T, ((0, 0), (0, n_pad - n)))

    def pad_vec(v, fill):
        return jnp.pad(v, (0, n_pad - n), constant_values=fill).reshape(1, n_pad)

    scores_t = jnp.stack([pad_scores_t(sbj_scores), pad_scores_t(obj_scores)], 0)  # (2, C, N_PAD)
    labels = jnp.stack([pad_vec(lab_s, 0), pad_vec(lab_o, 0)], 0)                  # (2, 1, N_PAD)
    reverse = jnp.stack([pad_vec(rev_s, -1), pad_vec(rev_o, -1)], 0)               # (2, 1, N_PAD)
    counts = jnp.array([[n, g_s], [n, g_o]], jnp.int32)                            # (2, 2) -> SMEM

    kernel = functools.partial(_contrastive_kernel,
                               margin=float(node_contrastive_margin), g_pad=g_pad)
    out = pl.pallas_call(
        kernel,
        out_shape=jax.ShapeDtypeStruct((2, 1, 1), jnp.float32),
        grid_spec=pltpu.PrefetchScalarGridSpec(
            num_scalar_prefetch=1,
            grid=(2,),
            in_specs=[
                pl.BlockSpec((None, c, n_pad), lambda i, counts: (i, 0, 0)),
                pl.BlockSpec((None, 1, n_pad), lambda i, counts: (i, 0, 0)),
                pl.BlockSpec((None, 1, n_pad), lambda i, counts: (i, 0, 0)),
            ],
            out_specs=pl.BlockSpec((None, 1, 1), lambda i, counts: (i, 0, 0)),
        ),
        compiler_params=pltpu.CompilerParams(dimension_semantics=("parallel",)),
    )(counts, scores_t, labels, reverse)
    return out[0, 0, 0], out[1, 0, 0]


def _ref_node_contrastive(scores, binary_labels, inds_unique, inds_reverse, margin):
    """Pure-numpy reference mirroring the original PyTorch loop implementation."""
    scores = np.asarray(scores, np.float64)
    e = np.exp(scores - scores.max(axis=1, keepdims=True))
    probs = e / e.sum(axis=1, keepdims=True)
    pos_prob = 1.0 - probs[:, 0]
    binary_labels = np.asarray(binary_labels)
    inds_reverse = np.asarray(inds_reverse)
    pair_pos, pair_neg = [1.0], [0.0]
    for i in range(int(np.asarray(inds_unique).shape[0])):
        inds = np.where(inds_reverse == i)[0]
        lab_i = binary_labels[inds]
        p_i = pos_prob[inds]
        pos_i = np.where(lab_i > 0)[0]
        neg_i = np.where(lab_i == 0)[0]
        if pos_i.size == 0 or neg_i.size == 0:
            continue
        pair_pos.append(p_i[pos_i].min())
        pair_neg.append(p_i[neg_i].max())
    pp, pn = np.array(pair_pos), np.array(pair_neg)
    return float(np.mean(np.maximum(0.0, -(pp - pn) + margin)))


if __name__ == "__main__":
    key = jax.random.PRNGKey(0)
    N, C, G_S, G_O = 16, 9, 5, 6   # 16 relation pairs, 9 predicate classes
    ks = jax.random.split(key, 6)

    prd_scores_sbj_pos = jax.random.normal(ks[0], (N, C), jnp.float32)
    prd_scores_obj_pos = jax.random.normal(ks[1], (N, C), jnp.float32)
    rel_ret = {
        "binary_labels_sbj_pos_int32": jax.random.randint(ks[2], (N,), 0, 2, jnp.int32),
        "inds_reverse_sbj_pos": jax.random.randint(ks[3], (N,), 0, G_S, jnp.int32),
        "inds_unique_sbj_pos": jnp.arange(G_S, dtype=jnp.int32),
        "binary_labels_obj_pos_int32": jax.random.randint(ks[4], (N,), 0, 2, jnp.int32),
        "inds_reverse_obj_pos": jax.random.randint(ks[5], (N,), 0, G_O, jnp.int32),
        "inds_unique_obj_pos": jnp.arange(G_O, dtype=jnp.int32),
    }

    sbj_loss, obj_loss = reldn_contrastive_loss(
        prd_scores_sbj_pos, prd_scores_obj_pos, rel_ret, node_contrastive_margin=0.2)
    sbj_loss = jax.block_until_ready(sbj_loss)
    obj_loss = jax.block_until_ready(obj_loss)

    ref_sbj = _ref_node_contrastive(prd_scores_sbj_pos,
                                    rel_ret["binary_labels_sbj_pos_int32"],
                                    rel_ret["inds_unique_sbj_pos"],
                                    rel_ret["inds_reverse_sbj_pos"], 0.2)
    ref_obj = _ref_node_contrastive(prd_scores_obj_pos,
                                    rel_ret["binary_labels_obj_pos_int32"],
                                    rel_ret["inds_unique_obj_pos"],
                                    rel_ret["inds_reverse_obj_pos"], 0.2)

    np.testing.assert_allclose(float(sbj_loss), ref_sbj, rtol=1e-5, atol=1e-5)
    np.testing.assert_allclose(float(obj_loss), ref_obj, rtol=1e-5, atol=1e-5)
    print("KERNEL_OK")
</pallas_src>

<mosaic_0001>
module attributes {stable_mosaic.version = 11 : i64} {
  func.func @_contrastive_kernel(%arg0: i32, %arg1: memref<2x2xi32, #tpu.memory_space<smem>>, %arg2: memref<1x9x128xf32, #tpu.memory_space<vmem>>, %arg3: memref<1x1x128xi32, #tpu.memory_space<vmem>>, %arg4: memref<1x1x128xi32, #tpu.memory_space<vmem>>, %arg5: memref<1x1x1xf32, #tpu.memory_space<vmem>>) attributes {dimension_semantics = [#tpu.dimension_semantics<parallel>], iteration_bounds = array<i64: 2>, scalar_prefetch = 1 : i64, scratch_operands = 0 : i64, tpu.core_type = #tpu.core_type<tc>, window_params = [{transform_indices = @transform_0, window_bounds = array<i64: 1, 9, 128>}, {transform_indices = @transform_1, window_bounds = array<i64: 1, 1, 128>}, {transform_indices = @transform_2, window_bounds = array<i64: 1, 1, 128>}, {transform_indices = @transform_3, window_bounds = array<i64: 1, 1, 1>}]} {
    %0 = arith.index_cast %arg0 : i32 to index
    %c0 = arith.constant 0 : index
    %1 = memref.load %arg1[%0, %c0] : memref<2x2xi32, #tpu.memory_space<smem>>
    %2 = arith.index_cast %arg0 : i32 to index
    %c1 = arith.constant 1 : index
    %3 = memref.load %arg1[%2, %c1] : memref<2x2xi32, #tpu.memory_space<smem>>
    %c0_0 = arith.constant 0 : index
    %c0_1 = arith.constant 0 : index
    %c0_2 = arith.constant 0 : index
    %4 = vector.load %arg2[%c0_0, %c0_1, %c0_2] : memref<1x9x128xf32, #tpu.memory_space<vmem>>, vector<1x9x128xf32>
    %5 = vector.shape_cast %4 : vector<1x9x128xf32> to vector<9x128xf32>
    %c0_3 = arith.constant 0 : index
    %c0_4 = arith.constant 0 : index
    %c0_5 = arith.constant 0 : index
    %6 = vector.load %arg3[%c0_3, %c0_4, %c0_5] : memref<1x1x128xi32, #tpu.memory_space<vmem>>, vector<1x1x128xi32>
    %7 = vector.shape_cast %6 : vector<1x1x128xi32> to vector<1x128xi32>
    %c0_6 = arith.constant 0 : index
    %c0_7 = arith.constant 0 : index
    %c0_8 = arith.constant 0 : index
    %8 = vector.load %arg4[%c0_6, %c0_7, %c0_8] : memref<1x1x128xi32, #tpu.memory_space<vmem>>, vector<1x1x128xi32>
    %9 = vector.shape_cast %8 : vector<1x1x128xi32> to vector<1x128xi32>
    %cst = arith.constant dense<0xFF800000> : vector<128xf32>
    %10 = vector.multi_reduction <maximumf>, %5, %cst [0] : vector<9x128xf32> to vector<128xf32>
    %11 = vector.shape_cast %10 : vector<128xf32> to vector<1x128xf32>
    %12 = vector.broadcast %11 : vector<1x128xf32> to vector<9x128xf32>
    %13 = arith.subf %5, %12 : vector<9x128xf32>
    %14 = math.exp %13 : vector<9x128xf32>
    %cst_9 = arith.constant dense<0.000000e+00> : vector<128xf32>
    %15 = vector.multi_reduction <add>, %14, %cst_9 [0] : vector<9x128xf32> to vector<128xf32>
    %16 = vector.shape_cast %15 : vector<128xf32> to vector<1x128xf32>
    %17 = vector.extract_strided_slice %14 {offsets = [0, 0], sizes = [1, 128], strides = [1, 1]} : vector<9x128xf32> to vector<1x128xf32>
    %18 = tpu.reciprocal %16 : vector<1x128xf32> -> vector<1x128xf32>
    %19 = arith.mulf %17, %18 : vector<1x128xf32>
    %cst_10 = arith.constant 1.000000e+00 : f32
    %20 = vector.broadcast %cst_10 : f32 to vector<1x128xf32>
    %21 = arith.subf %20, %19 : vector<1x128xf32>
    %22 = tpu.iota {dimensions = array<i32: 1>} : vector<1x128xi32>
    %23 = vector.broadcast %1 : i32 to vector<1x128xi32>
    %24 = arith.cmpi slt, %22, %23 : vector<1x128xi32>
    %c-1_i32 = arith.constant -1 : i32
    %25 = vector.broadcast %c-1_i32 : i32 to vector<1x128xi32>
    %26 = arith.select %24, %9, %25 : vector<1x128xi1>, vector<1x128xi32>
    %c0_i32 = arith.constant 0 : i32
    %27 = vector.broadcast %c0_i32 : i32 to vector<1x128xi32>
    %28 = arith.cmpi sgt, %7, %27 : vector<1x128xi32>
    %cst_11 = arith.constant 1.000000e+30 : f32
    %29 = vector.broadcast %cst_11 : f32 to vector<1x128xf32>
    %30 = arith.select %28, %21, %29 : vector<1x128xi1>, vector<1x128xf32>
    %c0_i32_12 = arith.constant 0 : i32
    %31 = vector.broadcast %c0_i32_12 : i32 to vector<1x128xi32>
    %32 = arith.cmpi eq, %7, %31 : vector<1x128xi32>
    %cst_13 = arith.constant 0.000000e+00 : f32
    %cst_14 = arith.constant 1.000000e+30 : f32
    %33 = arith.subf %cst_13, %cst_14 : f32
    %34 = vector.broadcast %33 : f32 to vector<1x128xf32>
    %35 = arith.select %32, %21, %34 : vector<1x128xi1>, vector<1x128xf32>
    %36 = tpu.iota {dimensions = array<i32: 0>} : vector<8x128xi32>
    %37 = vector.broadcast %26 : vector<1x128xi32> to vector<8x128xi32>
    %38 = arith.cmpi eq, %37, %36 : vector<8x128xi32>
    %cst_15 = arith.constant 1.000000e+30 : f32
    %39 = vector.shape_cast %30 : vector<1x128xf32> to vector<1x128xf32>
    %40 = vector.broadcast %39 : vector<1x128xf32> to vector<8x128xf32>
    %41 = vector.broadcast %cst_15 : f32 to vector<8x128xf32>
    %42 = arith.select %38, %40, %41 : vector<8x128xi1>, vector<8x128xf32>
    %cst_16 = arith.constant 0.000000e+00 : f32
    %cst_17 = arith.constant 1.000000e+30 : f32
    %43 = arith.subf %cst_16, %cst_17 : f32
    %44 = vector.shape_cast %35 : vector<1x128xf32> to vector<1x128xf32>
    %45 = vector.broadcast %44 : vector<1x128xf32> to vector<8x128xf32>
    %46 = vector.broadcast %43 : f32 to vector<8x128xf32>
    %47 = arith.select %38, %45, %46 : vector<8x128xi1>, vector<8x128xf32>
    %cst_18 = arith.constant dense<0x7F800000> : vector<8xf32>
    %48 = vector.multi_reduction <minimumf>, %42, %cst_18 [1] : vector<8x128xf32> to vector<8xf32>
    %49 = vector.shape_cast %48 : vector<8xf32> to vector<8x1xf32>
    %cst_19 = arith.constant dense<0xFF800000> : vector<8xf32>
    %50 = vector.multi_reduction <maximumf>, %47, %cst_19 [1] : vector<8x128xf32> to vector<8xf32>
    %51 = vector.shape_cast %50 : vector<8xf32> to vector<8x1xf32>
    %52 = tpu.iota {dimensions = array<i32: 0>} : vector<8x1xi32>
    %cst_20 = arith.constant 1.000000e+30 : f32
    %cst_21 = arith.constant 5.000000e-01 : f32
    %53 = arith.mulf %cst_20, %cst_21 : f32
    %54 = vector.broadcast %53 : f32 to vector<8x1xf32>
    %55 = arith.cmpf olt, %49, %54 : vector<8x1xf32>
    %cst_22 = arith.constant 0.000000e+00 : f32
    %cst_23 = arith.constant 1.000000e+30 : f32
    %56 = arith.subf %cst_22, %cst_23 : f32
    %cst_24 = arith.constant 5.000000e-01 : f32
    %57 = arith.mulf %56, %cst_24 : f32
    %58 = vector.broadcast %57 : f32 to vector<8x1xf32>
    %59 = arith.cmpf ogt, %51, %58 : vector<8x1xf32>
    %60 = arith.andi %55, %59 : vector<8x1xi1>
    %61 = vector.broadcast %3 : i32 to vector<8x1xi32>
    %62 = arith.cmpi slt, %52, %61 : vector<8x1xi32>
    %63 = arith.andi %60, %62 : vector<8x1xi1>
    %64 = arith.subf %49, %51 : vector<8x1xf32>
    %cst_25 = arith.constant 2.000000e-01 : f32
    %65 = vector.broadcast %cst_25 : f32 to vector<8x1xf32>
    %66 = arith.subf %65, %64 : vector<8x1xf32>
    %cst_26 = arith.constant 0.000000e+00 : f32
    %67 = vector.broadcast %cst_26 : f32 to vector<8x1xf32>
    %68 = arith.maximumf %67, %66 : vector<8x1xf32>
    %cst_27 = arith.constant 0.000000e+00 : f32
    %69 = vector.broadcast %cst_27 : f32 to vector<8x1xf32>
    %70 = arith.select %63, %68, %69 : vector<8x1xi1>, vector<8x1xf32>
    %cst_28 = arith.constant dense<0.000000e+00> : vector<1xf32>
    %71 = vector.multi_reduction <add>, %70, %cst_28 [0] : vector<8x1xf32> to vector<1xf32>
    %72 = vector.shape_cast %71 : vector<1xf32> to vector<1x1xf32>
    %cst_29 = arith.constant 0.000000e+00 : f32
    %73 = vector.broadcast %cst_29 : f32 to vector<1x1xf32>
    %74 = arith.addf %72, %73 : vector<1x1xf32>
    %75 = arith.extui %63 : vector<8x1xi1> to vector<8x1xi32>
    %76 = arith.sitofp %75 : vector<8x1xi32> to vector<8x1xf32>
    %cst_30 = arith.constant dense<0.000000e+00> : vector<1xf32>
    %77 = vector.multi_reduction <add>, %76, %cst_30 [0] : vector<8x1xf32> to vector<1xf32>
    %78 = vector.shape_cast %77 : vector<1xf32> to vector<1x1xf32>
    %cst_31 = arith.constant 1.000000e+00 : f32
    %79 = vector.broadcast %cst_31 : f32 to vector<1x1xf32>
    %80 = arith.addf %78, %79 : vector<1x1xf32>
    %81 = arith.divf %74, %80 : vector<1x1xf32>
    %c0_32 = arith.constant 0 : index
    %c0_33 = arith.constant 0 : index
    %c0_34 = arith.constant 0 : index
    %82 = vector.load %arg5[%c0_32, %c0_33, %c0_34] : memref<1x1x1xf32, #tpu.memory_space<vmem>>, vector<1x1x1xf32>
    %83 = vector.shape_cast %82 : vector<1x1x1xf32> to vector<1x1xf32>
    %84 = vector.shape_cast %81 : vector<1x1xf32> to vector<1x1x1xf32>
    tpu.vector_store %arg5[%c0_32, %c0_33, %c0_34], %84 {strides = array<i32>} : memref<1x1x1xf32, #tpu.memory_space<vmem>>, vector<1x1x1xf32>,
    return
  }
  func.func @transform_0(%arg0: i32, %arg1: memref<2x2xi32, #tpu.memory_space<smem>>) -> (i32, i32, i32) {
    %c0_i32 = arith.constant 0 : i32
    %c0_i32_0 = arith.constant 0 : i32
    %c0_i32_1 = arith.constant 0 : i32
    return %arg0, %c0_i32, %c0_i32_0 : i32, i32, i32
  }
  func.func @transform_1(%arg0: i32, %arg1: memref<2x2xi32, #tpu.memory_space<smem>>) -> (i32, i32, i32) {
    %c0_i32 = arith.constant 0 : i32
    %c0_i32_0 = arith.constant 0 : i32
    %c0_i32_1 = arith.constant 0 : i32
    return %arg0, %c0_i32, %c0_i32_0 : i32, i32, i32
  }
  func.func @transform_2(%arg0: i32, %arg1: memref<2x2xi32, #tpu.memory_space<smem>>) -> (i32, i32, i32) {
    %c0_i32 = arith.constant 0 : i32
    %c0_i32_0 = arith.constant 0 : i32
    %c0_i32_1 = arith.constant 0 : i32
    return %arg0, %c0_i32, %c0_i32_0 : i32, i32, i32
  }
  func.func @transform_3(%arg0: i32, %arg1: memref<2x2xi32, #tpu.memory_space<smem>>) -> (i32, i32, i32) {
    %c0_i32 = arith.constant 0 : i32
    %c0_i32_0 = arith.constant 0 : i32
    %c0_i32_1 = arith.constant 0 : i32
    return %arg0, %c0_i32, %c0_i32_0 : i32, i32, i32
  }
}

</mosaic_0001>

<llo_original>
// kernel: tpu_custom_call.1
$region0: #{tpu_custom_call.1}
  #allocation0 [shape = 'u32[]', space=smem, size = 0x4, offset = 0x4, fixed_abs, tag = 'smem constant byte address 0x4 - core index']
  #allocation1 [shape = 'u32[144,128]{1,0:T(1,128)}', space=vmem, size = 0x12000, scoped, tag = 'internal scratch']
  #allocation2 [shape = 's32[1]{0}', space=sflag, size = 0x4, scoped, tag = 'scoped memory for tpu_custom_call.1']
  #allocation3 [shape = 'u8[1024]{0}', space=smem, size = 0x400, scoped, tag = 'prefetched SMEM operand 0']
  %s0 = inlined_call_operand.vmem [shape: s32[2,2], index: 0, kind: input, shape index: {}]
  %s1 = inlined_call_operand.vmem [shape: f32[2,9,128], index: 1, kind: input, shape index: {}]
  %s2 = inlined_call_operand.vmem [shape: s32[2,1,128], index: 2, kind: input, shape index: {}]
  %s3 = inlined_call_operand.vmem [shape: s32[2,1,128], index: 3, kind: input, shape index: {}]
  %s4 = inlined_call_operand.vmem [shape: f32[2,1,1], index: 4, kind: output, shape index: {}]
  %s5 = sld [smem:[#allocation0]]
  $region45: #{tpu_custom_call.1} parent=0
    _
  %s7 = ssub.s32 1, %s5
  %s8 = scalar_select 0, %s7, %s5
  %s9 = sshll.u32 %s0, 4
  %s10 = int_to_ptr.vmem [resolvable:$true] %s9
  %12 = dma.vmem_to_smem %s10, 32, [#allocation3], [#allocation2]
  %13 = dma.done [#allocation2], 32
  %14 = sfence
  loop: start=0, step=1, limit=4
  $region2: #{tpu_custom_call.1} parent=0 // loop_pre_header
    _
  $region3: #{tpu_custom_call.1} parent=0 // loop_header
    %s16 = sphi 0, %s20
    %p17 = scmp.ge.s32.totalorder %s16, 4
    %s26 = sphi 0, %s28
    %s29 = sphi 0, %s26
    %s30 = sphi 0, %s29
    %s46 = sphi 0, %s30
    %s52 = sphi 0, %s54
    %s55 = sphi 0, %s52
    %s56 = sphi 0, %s55
    %s72 = sphi 0, %s56
    %s78 = sphi 0, %s80
    %s81 = sphi 0, %s78
    %s82 = sphi 0, %s81
    %s98 = sphi 0, %s82
    %s104 = sphi 0, %s106
    %s107 = sphi 0, %s104
    %s108 = sphi 0, %s107
    %s124 = sphi 0, %s108
  $region4: #{tpu_custom_call.1} parent=0 // loop_header_branch
    %19 = sbr.rel (%p17) target = $region8
  $region5: #{tpu_custom_call.1} parent=0 // loop_body
    %s21 = ssub.s32 %s16, 1
    %s22 = ssub.s32 %s16, 2
    %s23 = sadd.s32 %s16, 1
    %s24 = ssub.s32 %s16, %s23
    %p25 = scmp.eq.s32.totalorder %s24, 0
    %s27 = sadd.s32 %s26, 1
    %s28 = scalar_select %p25, %s26, %s27
    %p31 = pneg %p25
    %p32 = scmp.eq.s32.totalorder %s16, 1
    %p33 = por %p31, %p32
    %p34 = scmp.ne.s32.totalorder %s26, %s29
    %p35 = scmp.eq.s32.totalorder %s16, 0
    %p36 = por %p34, %p35
    %p37 = scmp.ne.s32.totalorder %s26, %s29
    %p38 = scmp.eq.s32.totalorder %s21, 1
    %p39 = por %p37, %p38
    %p40 = scmp.ne.s32.totalorder %s29, %s30
    %p41 = scmp.eq.s32.totalorder %s21, 0
    %p42 = por %p40, %p41
    %p43 = scmp.ne.s32.totalorder %s29, %s30
    %p44 = scmp.eq.s32.totalorder %s22, 1
    %p45 = por %p43, %p44
    %p47 = scmp.ne.s32.totalorder %s30, %s46
    %p48 = scmp.eq.s32.totalorder %s22, 0
    %p49 = por %p47, %p48
    %s50 = ssub.s32 %s16, %s23
    %p51 = scmp.eq.s32.totalorder %s50, 0
    %s53 = sadd.s32 %s52, 1
    %s54 = scalar_select %p51, %s52, %s53
    %p57 = pneg %p51
    %p58 = scmp.eq.s32.totalorder %s16, 1
    %p59 = por %p57, %p58
    %p60 = scmp.ne.s32.totalorder %s52, %s55
    %p61 = scmp.eq.s32.totalorder %s16, 0
    %p62 = por %p60, %p61
    %p63 = scmp.ne.s32.totalorder %s52, %s55
    %p64 = scmp.eq.s32.totalorder %s21, 1
    %p65 = por %p63, %p64
    %p66 = scmp.ne.s32.totalorder %s55, %s56
    %p67 = scmp.eq.s32.totalorder %s21, 0
    %p68 = por %p66, %p67
    %p69 = scmp.ne.s32.totalorder %s55, %s56
    %p70 = scmp.eq.s32.totalorder %s22, 1
    %p71 = por %p69, %p70
    %p73 = scmp.ne.s32.totalorder %s56, %s72
    %p74 = scmp.eq.s32.totalorder %s22, 0
    %p75 = por %p73, %p74
    %s76 = ssub.s32 %s16, %s23
    %p77 = scmp.eq.s32.totalorder %s76, 0
    %s79 = sadd.s32 %s78, 1
    %s80 = scalar_select %p77, %s78, %s79
    %p83 = pneg %p77
    %p84 = scmp.eq.s32.totalorder %s16, 1
    %p85 = por %p83, %p84
    %p86 = scmp.ne.s32.totalorder %s78, %s81
    %p87 = scmp.eq.s32.totalorder %s16, 0
    %p88 = por %p86, %p87
    %p89 = scmp.ne.s32.totalorder %s78, %s81
    %p90 = scmp.eq.s32.totalorder %s21, 1
    %p91 = por %p89, %p90
    %p92 = scmp.ne.s32.totalorder %s81, %s82
    %p93 = scmp.eq.s32.totalorder %s21, 0
    %p94 = por %p92, %p93
    %p95 = scmp.ne.s32.totalorder %s81, %s82
    %p96 = scmp.eq.s32.totalorder %s22, 1
    %p97 = por %p95, %p96
    %p99 = scmp.ne.s32.totalorder %s82, %s98
    %p100 = scmp.eq.s32.totalorder %s22, 0
    %p101 = por %p99, %p100
    %s102 = ssub.s32 %s16, %s23
    %p103 = scmp.eq.s32.totalorder %s102, 0
    %s105 = sadd.s32 %s104, 1
    %s106 = scalar_select %p103, %s104, %s105
    %p109 = pneg %p103
    %p110 = scmp.eq.s32.totalorder %s16, 1
    %p111 = por %p109, %p110
    %p112 = scmp.ne.s32.totalorder %s104, %s107
    %p113 = scmp.eq.s32.totalorder %s16, 0
    %p114 = por %p112, %p113
    %p115 = scmp.ne.s32.totalorder %s104, %s107
    %p116 = scmp.eq.s32.totalorder %s21, 1
    %p117 = por %p115, %p116
    %p118 = scmp.ne.s32.totalorder %s107, %s108
    %p119 = scmp.eq.s32.totalorder %s21, 0
    %p120 = por %p118, %p119
    %p121 = scmp.ne.s32.totalorder %s107, %s108
    %p122 = scmp.eq.s32.totalorder %s22, 1
    %p123 = por %p121, %p122
    %p125 = scmp.ne.s32.totalorder %s108, %s124
    %p126 = scmp.eq.s32.totalorder %s22, 0
    %p127 = por %p125, %p126
    %p128 = scmp.le.s32.totalorder 1, %s16
    %p129 = scmp.lt.s32.totalorder %s16, 3
    %p130 = pnand %p128, %p129
    %p131 = pneg %p130
    // Predicated region
    $region9: #{tpu_custom_call.1} parent=5 // pred_check
      _
    $region10: #{tpu_custom_call.1} parent=5 // pred_check_branch
      %133 = sbr.rel (%p130) target = $region12
    $region11: #{tpu_custom_call.1} parent=5 // pred_region
      %s134 = ssub.s32 %s16, 1
    $region12: #{tpu_custom_call.1} parent=5 // pred_fallthru
      _
    %p135 = scmp.lt.s32.totalorder %s16, 2
    // Predicated region
    $region13: #{tpu_custom_call.1} parent=5 // pred_check
      %p136 = pneg %p135
    $region14: #{tpu_custom_call.1} parent=5 // pred_check_branch
      %138 = sbr.rel (%p136) target = $region16
    $region15: #{tpu_custom_call.1} parent=5 // pred_region
      // Predicated region
      $region17: #{tpu_custom_call.1} parent=15 // pred_check
        %p139 = pneg %p36
      $region18: #{tpu_custom_call.1} parent=15 // pred_check_branch
        %141 = sbr.rel (%p139) target = $region20
      $region19: #{tpu_custom_call.1} parent=15 // pred_region
        %p142 = scmp.lt.s32.totalorder %s16, 1
        %s143 = scalar_select %p142, %s16, 1
        %s144 = smul.addr %s143, 2
        %s145 = smul.addr %s144, 8
        %s146 = scalar_lea.vmem %s1, %s145
      $region20: #{tpu_custom_call.1} parent=15 // pred_fallthru
        _
      // Predicated region
      $region21: #{tpu_custom_call.1} parent=15 // pred_check
        %p147 = pneg %p62
      $region22: #{tpu_custom_call.1} parent=15 // pred_check_branch
        %149 = sbr.rel (%p147) target = $region24
      $region23: #{tpu_custom_call.1} parent=15 // pred_region
        %p150 = scmp.lt.s32.totalorder %s16, 1
        %s151 = scalar_select %p150, %s16, 1
        %s152 = scalar_lea.vmem %s2, %s151
      $region24: #{tpu_custom_call.1} parent=15 // pred_fallthru
        _
      // Predicated region
      $region25: #{tpu_custom_call.1} parent=15 // pred_check
        %p153 = pneg %p88
      $region26: #{tpu_custom_call.1} parent=15 // pred_check_branch
        %155 = sbr.rel (%p153) target = $region28
      $region27: #{tpu_custom_call.1} parent=15 // pred_region
        %p156 = scmp.lt.s32.totalorder %s16, 1
        %s157 = scalar_select %p156, %s16, 1
        %s158 = scalar_lea.vmem %s3, %s157
      $region28: #{tpu_custom_call.1} parent=15 // pred_fallthru
        _
    $region16: #{tpu_custom_call.1} parent=5 // pred_fallthru
      _
    %p159 = scmp.le.s32.totalorder 1, %s16
    %p160 = scmp.lt.s32.totalorder %s16, 3
    %p161 = pnand %p159, %p160
    %p162 = pneg %p161
    // Predicated region
    $region29: #{tpu_custom_call.1} parent=5 // pred_check
      _
    $region30: #{tpu_custom_call.1} parent=5 // pred_check_branch
      %164 = sbr.rel (%p161) target = $region32
    $region31: #{tpu_custom_call.1} parent=5 // pred_region
      %s165 = ssub.s32 %s16, 1
      %p166 = scmp.lt.s32.totalorder %s21, 1
      %s167 = scalar_select %p166, %s21, 1
      %s168 = smul.addr %s167, 2
      %s169 = smul.addr %s168, 8
      %s170 = scalar_lea.vmem %s1, %s169
      %p171 = pneg %p42
      %p172 = pneg %p39
      %p173 = scmp.lt.s32.totalorder %s21, 1
      %s174 = scalar_select %p173, %s21, 1
      %s175 = scalar_lea.vmem %s2, %s174
      %p176 = pneg %p68
      %p177 = pneg %p65
      %p178 = scmp.lt.s32.totalorder %s21, 1
      %s179 = scalar_select %p178, %s21, 1
      %s180 = scalar_lea.vmem %s3, %s179
      %p181 = pneg %p94
      %p182 = pneg %p91
      %p183 = pneg %p120
      %p184 = pneg %p117
      %p185 = scmp.lt.s32.totalorder %s21, 1
      %s186 = scalar_select %p185, %s21, 1
      %s187 = scalar_lea.vmem %s4, %s186
      %p188 = scmp.lt.s32.totalorder %s21, 1
      %s189 = scalar_select %p188, %s21, 1
      %s190 = smul.addr %s189, 2
      %s191 = smul.addr %s190, 8
      %s192 = scalar_lea.vmem %s1, %s191
      %p193 = scmp.lt.s32.totalorder %s21, 1
      %s194 = scalar_select %p193, %s21, 1
      %s195 = scalar_lea.vmem %s2, %s194
      %p196 = scmp.lt.s32.totalorder %s21, 1
      %s197 = scalar_select %p196, %s21, 1
      %s198 = scalar_lea.vmem %s3, %s197
      %p199 = scmp.lt.s32.totalorder %s21, 1
      %s200 = scalar_select %p199, %s21, 1
      %s201 = scalar_lea.vmem %s4, %s200
      %s202 = smul.u32 %s21, 128
      %s203 = sld [smem:[#allocation3 + %s202]]
      %s204 = sadd.s32 %s202, 1
      %s205 = sld [smem:[#allocation3 + %s204]]
      %v206 = vld [vmem:[%s192] sm:$0xff]
      %v207 = vld [vmem:[%s192 + $0x8] sm:$0x1]
      %v208 = vld [vmem:[%s195] sm:$0x1]
      %v209 = vld [vmem:[%s198] sm:$0x1]
      %vm210 = vcmask 1040384
      %v211 = vsel %vm210, %v207, -inf
      %v212 = vmax.f32 %v206, %v211
      %v213 = vrot.slane %v212, 4
      %v214 = vmax.f32 %v212, %v213
      %v215 = vrot.slane %v214, 2
      %v216 = vmax.f32 %v214, %v215
      %v217 = vrot.slane %v216, 1
      %v218 = vmax.f32 %v216, %v217
      %v219 = vsub.f32 %v206, %v218
      %v220 = vsub.f32 %v207, %v218
      %v221 = vmul.f32 %v219, 1.442695
      %v222 = vpow.pop %v221
      %v223 = vmul.f32 %v220, 1.442695
      %v224 = vpow.pop %v223
      %v225 = vsel %vm210, %v224, 0.0
      %v226 = vadd.f32 %v222, %v225
      %v227 = vrot.slane %v226, 4
      %v228 = vadd.f32 %v226, %v227
      %v229 = vrot.slane %v228, 2
      %v230 = vadd.f32 %v228, %v229
      %v231 = vrot.slane %v230, 1
      %v232 = vadd.f32 %v230, %v231
      %v233 = vrcp.pop %v232
      %v234 = vmul.f32 %v222, %v233
      %v235 = vsub.f32 1.0, %v234
      %v236 = vlaneseq
      %v237 = vand.u32 %v236, 127
      %v238 = vstv %s203
      %vm239 = vcmp.lt.s32.totalorder %v237, %v238
      %v240 = vsel %vm239, %v209, 4294967295
      %vm241 = vcmp.gt.s32.totalorder %v208, 0
      %v242 = vsel %vm241, %v235, 1e+30
      %vm243 = vcmp.eq.s32.totalorder %v208, 0
      %v244 = vsel %vm243, %v235, -1e+30
      %v245 = vlaneseq
      %v246 = vshrl.u32 %v245, 7
      %v247 = vlaneseq
      %v248 = vshrl.u32 %v247, 7
      %v249 = vsub.s32 0, %v248
      %v250 = vrot.slane %v240, %v249
      %vm251 = vcmp.eq.s32.totalorder %v250, %v246
      %v253 = vlaneseq
      %v254 = vshrl.u32 %v253, 7
      %v255 = vsub.s32 0, %v254
      %v256 = vrot.slane %v242, %v255
      %v258 = vsel %vm251, %v256, 1e+30
      %v260 = vlaneseq
      %v261 = vshrl.u32 %v260, 7
      %v262 = vsub.s32 0, %v261
      %v263 = vrot.slane %v244, %v262
      %v265 = vsel %vm251, %v263, -1e+30
      %266 = vmin.xlane.f32.xlu0 %v258
      %v267 = vpop.xlane.xlu0 %266
      %268 = vmax.xlane.f32.xlu0 %v265
      %v269 = vpop.xlane.xlu0 %268
      %vm270 = vcmp.lt.f32.partialorder %v267, 5e+29
      %vm271 = vcmp.gt.f32.partialorder %v269, -5e+29
      %vm272 = vmand %vm270, %vm271
      %v273 = vstv %s205
      %vm274 = vcmp.lt.s32.totalorder %v246, %v273
      %vm275 = vmand %vm272, %vm274
      %v276 = vsub.f32 %v267, %v269
      %v277 = vsub.f32 0.2, %v276
      %v278 = vmax.f32 %v277, 0.0
      %v279 = vsel %vm275, %v278, 0.0
      %v280 = vrot.slane %v279, 4
      %v281 = vadd.f32 %v279, %v280
      %v282 = vrot.slane %v281, 2
      %v283 = vadd.f32 %v281, %v282
      %v284 = vrot.slane %v283, 1
      %v285 = vadd.f32 %v283, %v284
      %v286 = vadd.f32 %v285, 0.0
      %v287 = vsel %vm275, 1, 0
      %v288 = vcvt.s32.f32 %v287
      %v289 = vrot.slane %v288, 4
      %v290 = vadd.f32 %v288, %v289
      %v291 = vrot.slane %v290, 2
      %v292 = vadd.f32 %v290, %v291
      %v293 = vrot.slane %v292, 1
      %v294 = vadd.f32 %v292, %v293
      %v295 = vadd.f32 %v294, 1.0
      %v296 = vrcp.pop %v295
      %v297 = vmul.f32 %v286, %v296
      %vm298 = vcmask 0
      %299 = vst.msk [vmem:[%s201] sm:$0x1] %vm298, %v297
      %p300 = scmp.lt.s32.totalorder %s21, 1
      %s301 = scalar_select %p300, %s21, 1
      %s302 = scalar_lea.vmem %s4, %s301
      // Predicated region
      $region33: #{tpu_custom_call.1} parent=31 // pred_check
        %p303 = pneg %p117
      $region34: #{tpu_custom_call.1} parent=31 // pred_check_branch
        %305 = sbr.rel (%p303) target = $region36
      $region35: #{tpu_custom_call.1} parent=31 // pred_region
        _
      $region36: #{tpu_custom_call.1} parent=31 // pred_fallthru
        _
    $region32: #{tpu_custom_call.1} parent=5 // pred_fallthru
      _
    %p306 = scmp.le.s32.totalorder 2, %s16
    // Predicated region
    $region37: #{tpu_custom_call.1} parent=5 // pred_check
      %p307 = pneg %p306
    $region38: #{tpu_custom_call.1} parent=5 // pred_check_branch
      %309 = sbr.rel (%p307) target = $region40
    $region39: #{tpu_custom_call.1} parent=5 // pred_region
      %s310 = ssub.s32 %s16, 2
      // Predicated region
      $region41: #{tpu_custom_call.1} parent=39 // pred_check
        %p311 = pneg %p123
      $region42: #{tpu_custom_call.1} parent=39 // pred_check_branch
        %313 = sbr.rel (%p311) target = $region44
      $region43: #{tpu_custom_call.1} parent=39 // pred_region
        %p314 = scmp.lt.s32.totalorder %s22, 1
        %s315 = scalar_select %p314, %s22, 1
        %s316 = scalar_lea.vmem %s4, %s315
      $region44: #{tpu_custom_call.1} parent=39 // pred_fallthru
        _
    $region40: #{tpu_custom_call.1} parent=5 // pred_fallthru
      _
  $region6: #{tpu_custom_call.1} parent=0 // loop_footer
    %s20 = sadd.s32 1, %s16
  $region7: #{tpu_custom_call.1} parent=0 // loop_footer_branch
    %15 = sbr.rel target = $region3
  $region8: #{tpu_custom_call.1} parent=0 // loop_exit
    _

</llo_original>
